<compile_context>
chip_gen: v7x
topology: tpu7x:2x2x1
jax: 0.10.0
libtpu: 0.0.40
codegen_flags: <defaults>
</compile_context>

<pallas_src>
import jax
import jax.numpy as jnp
from jax import lax
from jax.experimental import pallas as pl
from jax.experimental.pallas import tpu as pltpu


def _encoder_kernel(ids_ref, emb_ref, w_ref, b_ref, out_ref):
    # ids_ref: (TB*S, 1) int32 token ids for this batch block (flattened)
    # emb_ref: (Vp, H)   embedding table (row 0 is the padding row, all zeros)
    # w_ref  : (H, H)    nn.Linear weight in PyTorch (out, in) layout; y = x @ W^T
    # b_ref  : (1, H)    bias
    # out_ref: (TB, H)   per-batch-row max over the sequence of the linear outputs
    tbs = ids_ref.shape[0]
    vp, h = emb_ref.shape
    tb = out_ref.shape[0]
    s = tbs // tb

    # Fused embedding gather on the MXU: one-hot(ids) @ table. Exact 0/1
    # one-hot, so the result matches jnp.take bit-for-bit in f32.
    ids = ids_ref[...]                                               # (TB*S, 1)
    vocab_iota = lax.broadcasted_iota(jnp.int32, (tbs, vp), 1)       # (TB*S, Vp)
    onehot = (vocab_iota == ids).astype(jnp.float32)                 # (TB*S, Vp)
    x = jnp.dot(onehot, emb_ref[...],
                preferred_element_type=jnp.float32)                  # (TB*S, H)

    # Linear layer: contract x's last dim with the weight's last dim (== x @ W^T)
    # directly on the MXU; no transposed weight copy anywhere.
    y = lax.dot_general(
        x, w_ref[...],
        dimension_numbers=(((1,), (1,)), ((), ())),
        preferred_element_type=jnp.float32)                          # (TB*S, H)

    # Max-pool over the sequence, then add the bias once per output row
    # (bias is constant over s, so max_s(x W^T + b) == max_s(x W^T) + b).
    m = jnp.max(y.reshape(tb, s, h), axis=1)                         # (TB, H)
    out_ref[...] = (m + b_ref[...]).astype(out_ref.dtype)


def _pick_batch_block(B, S):
    """Number of batch rows fused per grid step.

    Aim for TB*S >= 128 so the fused matmul has a real M dimension, while
    keeping >= 2 grid steps when the batch allows it (a "parallel" batch-block
    axis lets v7x split steps across its two TensorCores). Sub-full blocks must
    have their sublane dim a multiple of 8, hence the TB % 8 check. Falls back
    to the whole batch in a single step for tiny configs (block == full array,
    which is always legal).
    """
    target = max(1, pl.cdiv(128, S))
    for tb in range(target, B):
        if B % tb == 0 and tb % 8 == 0:
            return tb
    return B


def sentence_encoder_forward(x_ids, emb_table, weight, bias):
    """x_ids: (B, S) int token ids. Returns (B, H) float32.

    Matches SentenceEncoder.forward: embedding -> linear ->
    max_pool1d(x.transpose(1, 2), x.shape[1]).squeeze()  (squeeze is a no-op
    for B > 1, so the result stays (B, H)).
    """
    B, S = x_ids.shape
    Vp, H = emb_table.shape

    TB = _pick_batch_block(B, S)
    num_blocks = B // TB

    # Flatten token ids so each grid step sees a contiguous (TB*S, 1) block;
    # lane dim stays 1 (ids are scalar per token), sublanes carry tokens.
    ids_flat = x_ids.reshape(B * S, 1).astype(jnp.int32)
    b2 = bias.reshape(1, H).astype(jnp.float32)

    out = pl.pallas_call(
        _encoder_kernel,
        out_shape=jax.ShapeDtypeStruct((B, H), jnp.float32),
        grid_spec=pltpu.PrefetchScalarGridSpec(
            num_scalar_prefetch=0,
            grid=(num_blocks,),
            in_specs=[
                pl.BlockSpec((TB * S, 1), lambda i: (i, 0)),   # token ids block
                pl.BlockSpec((Vp, H), lambda i: (0, 0)),       # embedding table (VMEM-resident)
                pl.BlockSpec((H, H), lambda i: (0, 0)),        # linear weight (VMEM-resident)
                pl.BlockSpec((1, H), lambda i: (0, 0)),        # bias
            ],
            out_specs=pl.BlockSpec((TB, H), lambda i: (i, 0)),  # dense (TB, H) output tile
        ),
        compiler_params=pltpu.CompilerParams(
            dimension_semantics=("parallel",)),
    )(ids_flat, emb_table.astype(jnp.float32), weight.astype(jnp.float32), b2)

    return out


def make_params(key, vocab_size, hidden_size):
    """Deterministic synthetic parameters matching the module's __init__ shapes."""
    k_emb, k_w, k_b = jax.random.split(key, 3)
    V = vocab_size + 1
    emb_table = jax.random.normal(k_emb, (V, hidden_size), dtype=jnp.float32) * 0.1
    # padding_idx=0 -> embedding row 0 is zero
    emb_table = emb_table.at[0].set(0.0)
    weight = jax.random.normal(k_w, (hidden_size, hidden_size), dtype=jnp.float32) * 0.1
    bias = jax.random.normal(k_b, (hidden_size,), dtype=jnp.float32) * 0.1
    return emb_table, weight, bias


if __name__ == "__main__":
    # Small config consistent with the module: hidden_size=32, vocab_size=20, max_length=8
    hidden_size = 32
    vocab_size = 20
    B, S = 2, 8

    key = jax.random.PRNGKey(0)
    k_params, k_ids = jax.random.split(key)
    emb_table, weight, bias = make_params(k_params, vocab_size, hidden_size)

    # token ids in [0, vocab_size] (0 = padding)
    x_ids = jax.random.randint(k_ids, (B, S), 0, vocab_size + 1, dtype=jnp.int32)

    fwd = jax.jit(sentence_encoder_forward)
    out = fwd(x_ids, emb_table, weight, bias)
    out = jax.block_until_ready(out)

    # Pure-JAX reference check of the same semantics (embedding -> linear -> max over seq).
    ref = jnp.max(jnp.take(emb_table, x_ids, axis=0) @ weight.T + bias, axis=1)
    assert out.shape == (B, hidden_size)
    assert jnp.allclose(out, ref, atol=1e-4, rtol=1e-4), float(jnp.max(jnp.abs(out - ref)))

    print("KERNEL_OK")
</pallas_src>

<mosaic_0001>
module attributes {stable_mosaic.version = 11 : i64} {
  func.func @_encoder_kernel(%arg0: i32, %arg1: memref<16x1xi32, #tpu.memory_space<vmem>>, %arg2: memref<21x32xf32, #tpu.memory_space<vmem>>, %arg3: memref<32x32xf32, #tpu.memory_space<vmem>>, %arg4: memref<1x32xf32, #tpu.memory_space<vmem>>, %arg5: memref<2x32xf32, #tpu.memory_space<vmem>>) attributes {dimension_semantics = [#tpu.dimension_semantics<parallel>], iteration_bounds = array<i64: 1>, scalar_prefetch = 0 : i64, scratch_operands = 0 : i64, tpu.core_type = #tpu.core_type<tc>, window_params = [{transform_indices = @transform_0, window_bounds = array<i64: 16, 1>}, {pipeline_mode = #tpu.pipeline_mode<synchronous>, transform_indices = @transform_1, window_bounds = array<i64: 21, 32>}, {pipeline_mode = #tpu.pipeline_mode<synchronous>, transform_indices = @transform_2, window_bounds = array<i64: 32, 32>}, {pipeline_mode = #tpu.pipeline_mode<synchronous>, transform_indices = @transform_3, window_bounds = array<i64: 1, 32>}, {transform_indices = @transform_4, window_bounds = array<i64: 2, 32>}]} {
    %c0 = arith.constant 0 : index
    %c0_0 = arith.constant 0 : index
    %0 = vector.load %arg1[%c0, %c0_0] : memref<16x1xi32, #tpu.memory_space<vmem>>, vector<16x1xi32>
    %1 = tpu.iota {dimensions = array<i32: 1>} : vector<16x21xi32>
    %2 = vector.broadcast %0 : vector<16x1xi32> to vector<16x21xi32>
    %3 = arith.cmpi eq, %1, %2 : vector<16x21xi32>
    %4 = arith.extui %3 : vector<16x21xi1> to vector<16x21xi32>
    %5 = arith.sitofp %4 : vector<16x21xi32> to vector<16x21xf32>
    %c0_1 = arith.constant 0 : index
    %c0_2 = arith.constant 0 : index
    %6 = vector.load %arg2[%c0_1, %c0_2] : memref<21x32xf32, #tpu.memory_space<vmem>>, vector<21x32xf32>
    %cst = arith.constant dense<0.000000e+00> : vector<16x32xf32>
    %7 = tpu.matmul %5, %6, %cst {dimension_numbers = #tpu.dot_dimension_numbers<[1], [0], [0], [1], [0, 0, 1, 1], [], []>} : vector<16x21xf32>, vector<21x32xf32>, vector<16x32xf32> -> vector<16x32xf32>
    %c0_3 = arith.constant 0 : index
    %c0_4 = arith.constant 0 : index
    %8 = vector.load %arg3[%c0_3, %c0_4] : memref<32x32xf32, #tpu.memory_space<vmem>>, vector<32x32xf32>
    %cst_5 = arith.constant dense<0.000000e+00> : vector<16x32xf32>
    %9 = tpu.matmul %7, %8, %cst_5 {dimension_numbers = #tpu.dot_dimension_numbers<[1], [1], [0], [0], [0, 0, 1, 0], [], []>} : vector<16x32xf32>, vector<32x32xf32>, vector<16x32xf32> -> vector<16x32xf32>
    %10 = vector.shape_cast %9 : vector<16x32xf32> to vector<2x8x32xf32>
    %cst_6 = arith.constant dense<0xFF800000> : vector<2x32xf32>
    %11 = vector.multi_reduction <maximumf>, %10, %cst_6 [1] : vector<2x8x32xf32> to vector<2x32xf32>
    %c0_7 = arith.constant 0 : index
    %c0_8 = arith.constant 0 : index
    %12 = vector.load %arg4[%c0_7, %c0_8] : memref<1x32xf32, #tpu.memory_space<vmem>>, vector<1x32xf32>
    %13 = vector.broadcast %12 : vector<1x32xf32> to vector<2x32xf32>
    %14 = arith.addf %11, %13 : vector<2x32xf32>
    %c0_9 = arith.constant 0 : index
    %c0_10 = arith.constant 0 : index
    %15 = vector.load %arg5[%c0_9, %c0_10] : memref<2x32xf32, #tpu.memory_space<vmem>>, vector<2x32xf32>
    tpu.vector_store %arg5[%c0_9, %c0_10], %14 {strides = array<i32>} : memref<2x32xf32, #tpu.memory_space<vmem>>, vector<2x32xf32>,
    return
  }
  func.func @transform_0(%arg0: i32) -> (i32, i32) {
    %c0_i32 = arith.constant 0 : i32
    %c0_i32_0 = arith.constant 0 : i32
    return %arg0, %c0_i32 : i32, i32
  }
  func.func @transform_1(%arg0: i32) -> (i32, i32) {
    %c0_i32 = arith.constant 0 : i32
    %c0_i32_0 = arith.constant 0 : i32
    %c0_i32_1 = arith.constant 0 : i32
    return %c0_i32, %c0_i32_0 : i32, i32
  }
  func.func @transform_2(%arg0: i32) -> (i32, i32) {
    %c0_i32 = arith.constant 0 : i32
    %c0_i32_0 = arith.constant 0 : i32
    %c0_i32_1 = arith.constant 0 : i32
    return %c0_i32, %c0_i32_0 : i32, i32
  }
  func.func @transform_3(%arg0: i32) -> (i32, i32) {
    %c0_i32 = arith.constant 0 : i32
    %c0_i32_0 = arith.constant 0 : i32
    %c0_i32_1 = arith.constant 0 : i32
    return %c0_i32, %c0_i32_0 : i32, i32
  }
  func.func @transform_4(%arg0: i32) -> (i32, i32) {
    %c0_i32 = arith.constant 0 : i32
    %c0_i32_0 = arith.constant 0 : i32
    return %arg0, %c0_i32 : i32, i32
  }
}

</mosaic_0001>

<llo_original>
// kernel: sentence_encoder_forward.1
$region0: #{sentence_encoder_forward.1}
  #allocation0 [shape = 'u32[]', space=smem, size = 0x4, offset = 0x4, fixed_abs, tag = 'smem constant byte address 0x4 - core index']
  #allocation1 [shape = 'u32[144,128]{1,0:T(1,128)}', space=vmem, size = 0x12000, scoped, tag = 'internal scratch']
  %s0 = inlined_call_operand.vmem [shape: s32[16,1], index: 0, kind: input, shape index: {}]
  %s1 = inlined_call_operand.vmem [shape: f32[21,32], index: 1, kind: input, shape index: {}]
  %s2 = inlined_call_operand.hbm [shape: f32[32,32], index: 2, kind: input, shape index: {}]
  %s3 = inlined_call_operand.vmem [shape: f32[1,32], index: 3, kind: input, shape index: {}]
  %s4 = inlined_call_operand.hbm [shape: f32[2,32], index: 4, kind: output, shape index: {}]
  %s5 = sld [smem:[#allocation0]]
  $region30: #{sentence_encoder_forward.1} parent=0
    _
  %s7 = ssub.s32 1, %s5
  %s8 = scalar_select 0, %s7, %s5
  $region1: #{sentence_encoder_forward.1} parent=0
    #allocation2 [shape = 'u8[16384]{0}', space=vmem, size = 0x4000, scoped, tag = 'input window, operand 2, single buffered']
    #allocation3 [shape = 's32[1]{0}', space=sflag, size = 0x4, scoped, tag = 'scoped memory for sentence_encoder_forward.1']
    #allocation4 [shape = 's32[1]{0}', space=sflag, size = 0x4, scoped, tag = 'scoped memory for sentence_encoder_forward.1']
    #allocation5 [shape = 'u8[1024]{0}', space=vmem, size = 0x400, scoped, tag = 'output window, operand 0, single buffered']
    %9 = vsyncpa [#allocation3], 0
    %10 = vsyncpa [#allocation4], 0
    // Predicated region
    $region2: #{sentence_encoder_forward.1} parent=1 // pred_check
      _
    $region3: #{sentence_encoder_forward.1} parent=1 // pred_check_branch
      %12 = sbr.rel (0) target = $region5
    $region4: #{sentence_encoder_forward.1} parent=1 // pred_region
      _
    $region5: #{sentence_encoder_forward.1} parent=1 // pred_fallthru
      _
    // Predicated region
    $region6: #{sentence_encoder_forward.1} parent=1 // pred_check
      _
    $region7: #{sentence_encoder_forward.1} parent=1 // pred_check_branch
      %14 = sbr.rel (0) target = $region9
    $region8: #{sentence_encoder_forward.1} parent=1 // pred_region
      _
    $region9: #{sentence_encoder_forward.1} parent=1 // pred_fallthru
      _
    // Predicated region
    $region10: #{sentence_encoder_forward.1} parent=1 // pred_check
      _
    $region11: #{sentence_encoder_forward.1} parent=1 // pred_check_branch
      %16 = sbr.rel (0) target = $region13
    $region12: #{sentence_encoder_forward.1} parent=1 // pred_region
      %s18 = ssub.s32 512, 512
      %19 = vsyncadd [#allocation3], %s18
      %s20 = sshll.u32 [#allocation2], 4
      %s21 = int_to_ptr.vmem [resolvable:$true] %s20
      %26 = dma.hbm_to_vmem [thread:$0]  %s2, 512, %s21, [#allocation3], 128, 128, 8
    $region13: #{sentence_encoder_forward.1} parent=1 // pred_fallthru
      _
    // Predicated region
    $region14: #{sentence_encoder_forward.1} parent=1 // pred_check
      _
    $region15: #{sentence_encoder_forward.1} parent=1 // pred_check_branch
      %28 = sbr.rel (0) target = $region17
    $region16: #{sentence_encoder_forward.1} parent=1 // pred_region
      _
    $region17: #{sentence_encoder_forward.1} parent=1 // pred_fallthru
      _
    // Predicated region
    $region18: #{sentence_encoder_forward.1} parent=1 // pred_check
      _
    $region19: #{sentence_encoder_forward.1} parent=1 // pred_check_branch
      %30 = sbr.rel (0) target = $region21
    $region20: #{sentence_encoder_forward.1} parent=1 // pred_region
      %31 = dma.done [#allocation3], 512
    $region21: #{sentence_encoder_forward.1} parent=1 // pred_fallthru
      _
    %v32 = vld [vmem:[%s0] sm:$0xff]
    %v33 = vld [vmem:[%s0 + $0x8] sm:$0xff]
    %v34 = vlaneseq
    %v35 = vand.u32 %v34, 127
    %36 = vset.pattern.permute.xlu0 0
    %37 = vperm.xlu0 %36, %v32
    %v38 = vpop.permute.xlu0 %37
    %39 = vset.pattern.permute.xlu0 0
    %40 = vperm.xlu0 %39, %v33
    %v41 = vpop.permute.xlu0 %40
    %vm42 = vcmp.eq.s32.totalorder %v35, %v38
    %vm43 = vcmp.eq.s32.totalorder %v35, %v41
    %v44 = vsel %vm42, 1, 0
    %v45 = vsel %vm43, 1, 0
    %v46 = vcvt.s32.f32 %v44
    %v47 = vcvt.s32.f32 %v45
    %v48 = vld [vmem:[%s1] sm:$0xff]
    %v49 = vld [vmem:[%s1 + $0x8] sm:$0xff]
    %v50 = vld [vmem:[%s1 + $0x10] sm:$0x1f]
    %vm51 = vcmask 171008
    %v53 = vsel %vm51, %v46, 0
    %v56 = vsel %vm51, %v47, 0
    %vm58 = vcmask 1044480
    %v60 = vsel %vm58, %v50, 0
    %62 = vmatprep.subr.mxu0 0.0
    %63 = vmatpush1.msra.mxu0 %v48
    %64 = vmatprep.subr.mxu0 0.0
    %65 = vmatpush1.msra.mxu0 %v49
    %66 = vmatprep.subr.mxu0 0.0
    %67 = vmatpush1.msra.mxu0 %v60
    %68 = vmatprep.subr.mxu0 0.0
    %69 = vmatpush1.msra.mxu0 0.0
    %70 = vmatprep.subr.mxu0 0.0
    %71 = vmatpush1.msra.mxu0 0.0
    %72 = vmatprep.subr.mxu0 0.0
    %73 = vmatpush1.msra.mxu0 0.0
    %74 = vmatprep.subr.mxu0 0.0
    %75 = vmatpush1.msra.mxu0 0.0
    %76 = vmatprep.subr.mxu0 0.0
    %77 = vmatpush1.msra.mxu0 0.0
    %78 = vmatprep.subr.mxu0 0.0
    %79 = vmatpush1.msra.mxu0 0.0
    %80 = vmatprep.subr.mxu0 0.0
    %81 = vmatpush1.msra.mxu0 0.0
    %82 = vmatprep.subr.mxu0 0.0
    %83 = vmatpush1.msra.mxu0 0.0
    %84 = vmatprep.subr.mxu0 0.0
    %85 = vmatpush1.msra.mxu0 0.0
    %86 = vmatprep.subr.mxu0 0.0
    %87 = vmatpush1.msra.mxu0 0.0
    %88 = vmatprep.subr.mxu0 0.0
    %89 = vmatpush1.msra.mxu0 0.0
    %90 = vmatprep.subr.mxu0 0.0
    %91 = vmatpush1.msra.mxu0 0.0
    %92 = vmatprep.subr.mxu0 0.0
    %93 = vmatpush1.msra.mxu0 0.0
    %94 = vmatprep.subr.mxu0 0.0
    %95 = vmatpush1.msra.mxu0 0.0
    %96 = vmatprep.subr.mxu0 0.0
    %97 = vmatpush1.msra.mxu0 0.0
    %98 = vmatprep.subr.mxu0 0.0
    %99 = vmatpush1.msra.mxu0 0.0
    %100 = vmatprep.subr.mxu0 0.0
    %101 = vmatpush1.msra.mxu0 0.0
    %102 = vmatprep.subr.mxu0 0.0
    %103 = vmatpush1.msra.mxu0 0.0
    %104 = vmatprep.subr.mxu0 0.0
    %105 = vmatpush1.msra.mxu0 0.0
    %106 = vmatprep.subr.mxu0 0.0
    %107 = vmatpush1.msra.mxu0 0.0
    %108 = vmatprep.subr.mxu0 0.0
    %109 = vmatpush1.msra.mxu0 0.0
    %110 = vmatprep.subr.mxu0 0.0
    %111 = vmatpush1.msra.mxu0 0.0
    %112 = vmatprep.subr.mxu0 0.0
    %113 = vmatpush1.msra.mxu0 0.0
    %114 = vmatprep.subr.mxu0 0.0
    %115 = vmatpush1.msra.mxu0 0.0
    %116 = vmatprep.subr.mxu0 0.0
    %117 = vmatpush1.msra.mxu0 0.0
    %118 = vmatprep.subr.mxu0 0.0
    %119 = vmatpush1.msra.mxu0 0.0
    %120 = vmatprep.subr.mxu0 0.0
    %121 = vmatpush1.msra.mxu0 0.0
    %122 = vmatprep.subr.mxu0 0.0
    %123 = vmatpush1.msra.mxu0 0.0
    %124 = vmatprep.subr.mxu0 0.0
    %125 = vmatpush1.msra.mxu0 0.0
    %126 = vmatprep.mubr.f32.mxu0 0.0
    %127 = vmatmul.mubr.f32.gmra.mrb[0].mxu0 %v53
    %v128 = vpop.f32.mrb[0].mxu0
    %v129 = vadd.f32 0.0, %v128
    %v130 = vpop.f32.mrb[0].mxu0
    %131 = vmatprep.mubr.f32.mxu0 0.0
    %132 = vmatmul.mubr.f32.gmra.mrb[0].mxu0 %v56
    %v133 = vpop.f32.mrb[0].mxu0
    %v134 = vadd.f32 0.0, %v133
    %v135 = vpop.f32.mrb[0].mxu0
    %136 = vdwg.mxu0
    %v137 = vld [vmem:[#allocation2] sm:$0xff]
    %v138 = vld [vmem:[#allocation2 + $0x8] sm:$0xff]
    %v139 = vld [vmem:[#allocation2 + $0x10] sm:$0xff]
    %v140 = vld [vmem:[#allocation2 + $0x18] sm:$0xff]
    %vm141 = vcmask 261120
    %v143 = vsel %vm141, %v129, 0
    %v146 = vsel %vm141, %v134, 0
    %v149 = vsel %vm141, %v137, 0
    %v152 = vsel %vm141, %v138, 0
    %v155 = vsel %vm141, %v139, 0
    %v158 = vsel %vm141, %v140, 0
    %160 = vmatprep.subr.mxu0 0.0
    %161 = vmatpush1.xpose.msra.mxu0 %v149
    %162 = vmatprep.subr.mxu0 0.0
    %163 = vmatpush1.xpose.msra.mxu0 %v152
    %164 = vmatprep.subr.mxu0 0.0
    %165 = vmatpush1.xpose.msra.mxu0 %v155
    %166 = vmatprep.subr.mxu0 0.0
    %167 = vmatpush1.xpose.msra.mxu0 %v158
    %168 = vmatprep.subr.mxu0 0.0
    %169 = vmatpush1.xpose.msra.mxu0 0.0
    %170 = vmatprep.subr.mxu0 0.0
    %171 = vmatpush1.xpose.msra.mxu0 0.0
    %172 = vmatprep.subr.mxu0 0.0
    %173 = vmatpush1.xpose.msra.mxu0 0.0
    %174 = vmatprep.subr.mxu0 0.0
    %175 = vmatpush1.xpose.msra.mxu0 0.0
    %176 = vmatprep.subr.mxu0 0.0
    %177 = vmatpush1.xpose.msra.mxu0 0.0
    %178 = vmatprep.subr.mxu0 0.0
    %179 = vmatpush1.xpose.msra.mxu0 0.0
    %180 = vmatprep.subr.mxu0 0.0
    %181 = vmatpush1.xpose.msra.mxu0 0.0
    %182 = vmatprep.subr.mxu0 0.0
    %183 = vmatpush1.xpose.msra.mxu0 0.0
    %184 = vmatprep.subr.mxu0 0.0
    %185 = vmatpush1.xpose.msra.mxu0 0.0
    %186 = vmatprep.subr.mxu0 0.0
    %187 = vmatpush1.xpose.msra.mxu0 0.0
    %188 = vmatprep.subr.mxu0 0.0
    %189 = vmatpush1.xpose.msra.mxu0 0.0
    %190 = vmatprep.subr.mxu0 0.0
    %191 = vmatpush1.xpose.msra.mxu0 0.0
    %192 = vmatprep.subr.mxu0 0.0
    %193 = vmatpush1.xpose.msra.mxu0 0.0
    %194 = vmatprep.subr.mxu0 0.0
    %195 = vmatpush1.xpose.msra.mxu0 0.0
    %196 = vmatprep.subr.mxu0 0.0
    %197 = vmatpush1.xpose.msra.mxu0 0.0
    %198 = vmatprep.subr.mxu0 0.0
    %199 = vmatpush1.xpose.msra.mxu0 0.0
    %200 = vmatprep.subr.mxu0 0.0
    %201 = vmatpush1.xpose.msra.mxu0 0.0
    %202 = vmatprep.subr.mxu0 0.0
    %203 = vmatpush1.xpose.msra.mxu0 0.0
    %204 = vmatprep.subr.mxu0 0.0
    %205 = vmatpush1.xpose.msra.mxu0 0.0
    %206 = vmatprep.subr.mxu0 0.0
    %207 = vmatpush1.xpose.msra.mxu0 0.0
    %208 = vmatprep.subr.mxu0 0.0
    %209 = vmatpush1.xpose.msra.mxu0 0.0
    %210 = vmatprep.subr.mxu0 0.0
    %211 = vmatpush1.xpose.msra.mxu0 0.0
    %212 = vmatprep.subr.mxu0 0.0
    %213 = vmatpush1.xpose.msra.mxu0 0.0
    %214 = vmatprep.subr.mxu0 0.0
    %215 = vmatpush1.xpose.msra.mxu0 0.0
    %216 = vmatprep.subr.mxu0 0.0
    %217 = vmatpush1.xpose.msra.mxu0 0.0
    %218 = vmatprep.subr.mxu0 0.0
    %219 = vmatpush1.xpose.msra.mxu0 0.0
    %220 = vmatprep.subr.mxu0 0.0
    %221 = vmatpush1.xpose.msra.mxu0 0.0
    %222 = vmatprep.subr.mxu0 0.0
    %223 = vmatpush1.xpose.msra.mxu0 0.0
    %224 = vmatprep.mubr.f32.mxu0 0.0
    %225 = vmatmul.mubr.f32.gmra.mrb[0].mxu0 %v143
    %v226 = vpop.f32.mrb[0].mxu0
    %v227 = vadd.f32 0.0, %v226
    %v228 = vpop.f32.mrb[0].mxu0
    %229 = vmatprep.mubr.f32.mxu0 0.0
    %230 = vmatmul.mubr.f32.gmra.mrb[0].mxu0 %v146
    %v231 = vpop.f32.mrb[0].mxu0
    %v232 = vadd.f32 0.0, %v231
    %v233 = vpop.f32.mrb[0].mxu0
    %234 = vdwg.mxu0
    %v235 = vsel %vm141, %v227, -inf
    %v236 = vrot.slane %v235, 4
    %v237 = vmax.f32 %v235, %v236
    %v238 = vrot.slane %v237, 2
    %v239 = vmax.f32 %v237, %v238
    %v240 = vrot.slane %v239, 1
    %v241 = vmax.f32 %v239, %v240
    %v242 = vsel %vm141, %v232, -inf
    %v243 = vrot.slane %v242, 4
    %v244 = vmax.f32 %v242, %v243
    %v245 = vrot.slane %v244, 2
    %v246 = vmax.f32 %v244, %v245
    %v247 = vrot.slane %v246, 1
    %v248 = vmax.f32 %v246, %v247
    %v249 = vld [vmem:[%s3] sm:$0x1]
    %v251 = vlaneseq
    %v252 = vshrl.u32 %v251, 7
    %v253 = vsub.s32 0, %v252
    %v254 = vrot.slane %v249, %v253
    %v256 = vadd.f32 %v241, %v254
    %v257 = vadd.f32 %v248, %v254
    %v260 = vrot.slane %v257, 7
    %vm261 = vcmask 1041409
    %v262 = vsel %vm261, %v260, %v256
    %vm264 = vcmask 254976
    %265 = vst.msk [vmem:[#allocation5] sm:$0x3] %vm264, %v262
    // Predicated region
    $region22: #{sentence_encoder_forward.1} parent=1 // pred_check
      _
    $region23: #{sentence_encoder_forward.1} parent=1 // pred_check_branch
      %267 = sbr.rel (0) target = $region25
    $region24: #{sentence_encoder_forward.1} parent=1 // pred_region
      %s269 = ssub.s32 32, 32
      %270 = vsyncadd [#allocation4], %s269
      %s272 = sshll.u32 [#allocation5], 4
      %s273 = int_to_ptr.vmem [resolvable:$true] %s272
      %275 = dma.vmem_to_hbm [thread:$0]  %s273, 32, %s4, [#allocation4]
    $region25: #{sentence_encoder_forward.1} parent=1 // pred_fallthru
      _
    // Predicated region
    $region26: #{sentence_encoder_forward.1} parent=1 // pred_check
      _
    $region27: #{sentence_encoder_forward.1} parent=1 // pred_check_branch
      %277 = sbr.rel (0) target = $region29
    $region28: #{sentence_encoder_forward.1} parent=1 // pred_region
      %278 = dma.done [#allocation4], 32
    $region29: #{sentence_encoder_forward.1} parent=1 // pred_fallthru
      _
    %279 = vsyncpa [#allocation3], 1
    %280 = vsyncpa [#allocation4], 1

</llo_original>
